<compile_context>
chip_gen: v7x
topology: tpu7x:2x2x1
jax: 0.10.0
libtpu: 0.0.40
codegen_flags: <defaults>
</compile_context>

<pallas_src>
import numpy as np
import jax
import jax.numpy as jnp
from jax.experimental import pallas as pl
from jax.experimental.pallas import tpu as pltpu


# ----------------------------------------------------------------------------
# Setup glue: complex -> real Clebsch-Gordan "transformation" table.
# TODO(synk): the original get_real_clebsch_gordan helper is not provided in
# the prompt; this deterministic reimplementation keeps the exact structure the
# module consumes (per-mu lists of (m1_index, m2_index, multiplier)) but the
# exact complex->real sign convention of the original helper is approximated.
# ----------------------------------------------------------------------------
def get_real_clebsch_gordan(clebsch, l1, l2, lambd):
    transformation = {mu: [] for mu in range(2 * lambd + 1)}
    for mu in range(2 * lambd + 1):
        m_out = mu - lambd
        for m1 in range(-l1, l1 + 1):
            m2 = m_out - m1
            if -l2 <= m2 <= l2:
                mult = float(clebsch[m1 + l1, m2 + l2])
                if mult != 0.0:
                    transformation[mu].append((m1 + l1, m2 + l2, mult))
    return transformation


# ----------------------------------------------------------------------------
# Tiling helpers
# ----------------------------------------------------------------------------
def _pick_lane_tile(B):
    """Largest 128-multiple in [128, 2048] that divides B; else full B."""
    for cand in (2048, 1024, 512, 256, 128):
        if B % cand == 0:
            return cand
    return B  # small / non-aligned B: take the whole axis (full-dim block ok)


def _pick_sublane_tile(A):
    """Tile A only when it is large; keep multiples of 8 (f32 sublane)."""
    if A <= 128 or A % 8 != 0:
        return A
    for cand in (128, 64, 32, 16, 8):
        if A % cand == 0:
            return cand
    return A


def _pick_chunk(ta, tb, n_out, budget_vregs=44):
    """Lane sub-chunk for the in-kernel compute loop.

    Live f32 vregs per sub-chunk ~= (n_out accumulators + product + 2 input
    slabs + 1 temp) * ceil(ta*chunk/1024).  Pick the largest 128-multiple that
    divides tb and keeps this under budget (register file = 64 vregs).
    """
    if tb % 128 != 0:
        return tb
    best = 128
    c = 128
    while c <= tb:
        if tb % c == 0:
            live = (n_out + 4) * (-(-(ta * c) // 1024))
            if live <= budget_vregs:
                best = c
        c += 128
    return best


# ----------------------------------------------------------------------------
# Pallas kernel: pair-major, CSE'd gather*gather*coeff segment-sum per mu.
# ----------------------------------------------------------------------------
def _make_cg_kernel(pair_terms, n_out, chunk):
    """pair_terms: tuple of ((m1, m2), ((mu, coeff), ...)) — each unique input
    product is computed once and fanned out (scaled) to every mu using it."""

    def kernel(x1_ref, x2_ref, o_ref):
        ta = o_ref.shape[1]
        tb = o_ref.shape[2]
        # Static Python loop over lane sub-chunks keeps live vregs bounded
        # even when the DMA block (tb) is large.
        for c0 in range(0, tb, chunk):
            w = min(chunk, tb - c0)
            sl = pl.ds(c0, w)
            accs = [None] * n_out
            for (i, j), uses in pair_terms:
                # per-m slabs loaded on demand (no full-block materialization)
                prod = (x1_ref[i, :, sl].astype(jnp.float32)
                        * x2_ref[j, :, sl].astype(jnp.float32))
                for mu, coeff in uses:
                    term = prod * coeff
                    # init-from-first-term: no zero-fill + extra vadd
                    accs[mu] = term if accs[mu] is None else accs[mu] + term
            for mu in range(n_out):
                if accs[mu] is None:
                    o_ref[mu, :, sl] = jnp.zeros((ta, w), o_ref.dtype)
                else:
                    o_ref[mu, :, sl] = accs[mu].astype(o_ref.dtype)

    return kernel


def clebsch_combine_pallas(X1, X2, pair_terms, n_out):
    """X1: (M1, A, B), X2: (M2, A, B) -> (n_out, A, B)."""
    M1, A, B = X1.shape
    M2, A2, B2 = X2.shape
    assert A2 == A and B2 == B

    tb = _pick_lane_tile(B)      # big lane tiles -> HBM DMA efficiency
    ta = _pick_sublane_tile(A)   # A-grid only for large feature counts
    chunk = _pick_chunk(ta, tb, n_out)

    kernel = _make_cg_kernel(pair_terms, n_out, chunk)

    grid = (A // ta, B // tb)
    return pl.pallas_call(
        kernel,
        out_shape=jax.ShapeDtypeStruct((n_out, A, B), X1.dtype),
        grid=grid,
        in_specs=[
            pl.BlockSpec((M1, ta, tb), lambda a, b: (0, a, b)),
            pl.BlockSpec((M2, ta, tb), lambda a, b: (0, a, b)),
        ],
        out_specs=pl.BlockSpec((n_out, ta, tb), lambda a, b: (0, a, b)),
        compiler_params=pltpu.CompilerParams(
            dimension_semantics=("parallel", "parallel"),
            vmem_limit_bytes=32 * 1024 * 1024,
        ),
    )(X1, X2)


# ----------------------------------------------------------------------------
# Module mirror (holds the unrolled index/multiplier tables, like __init__).
# ----------------------------------------------------------------------------
class ClebschCombiningSingleUnrolledPallas:
    def __init__(self, clebsch, lambd):
        self.clebsch = np.asarray(clebsch, dtype=np.float32)
        self.lambd = lambd
        self.l1 = (self.clebsch.shape[0] - 1) // 2
        self.l2 = (self.clebsch.shape[1] - 1) // 2
        transformation = get_real_clebsch_gordan(self.clebsch, self.l1,
                                                 self.l2, lambd)
        m1_aligned, m2_aligned, multipliers, mu = [], [], [], []
        for m in range(2 * lambd + 1):
            for (m1, m2, mult) in transformation[m]:
                m1_aligned.append(m1)
                m2_aligned.append(m2)
                multipliers.append(mult)
                mu.append(m)
        self.m1_aligned = np.asarray(m1_aligned, dtype=np.int32)
        self.m2_aligned = np.asarray(m2_aligned, dtype=np.int32)
        self.multipliers = np.asarray(multipliers, dtype=np.float32)
        self.mu = np.asarray(mu, dtype=np.int32)

        n_out = 2 * lambd + 1
        M1 = 2 * self.l1 + 1

        # Pair-major CSE table: unique (m1, m2) -> list of (mu, coeff) uses.
        pair_map = {}
        if lambd == 0:
            # torch path: sum over m of X1[m]*X2[m], scaled by multipliers[0]
            # (per-m coefficients are intentionally NOT applied, matching the
            # PyTorch shortcut).
            mult0 = float(self.multipliers[0])
            for m in range(M1):
                pair_map.setdefault((m, m), []).append((0, mult0))
        else:
            for t in range(len(self.mu)):
                key = (int(self.m1_aligned[t]), int(self.m2_aligned[t]))
                pair_map.setdefault(key, []).append(
                    (int(self.mu[t]), float(self.multipliers[t])))
        self.pair_terms = tuple((k, tuple(v)) for k, v in pair_map.items())
        self.n_out = n_out

    # TODO(synk): when a CG layer holds many small (l1,l2,lambda) blocks, batch
    # them into a single pallas_call (extra leading grid axis) at the caller
    # level to amortize the per-call / per-grid-step overhead.
    def __call__(self, X1, X2):
        return clebsch_combine_pallas(X1, X2, self.pair_terms, self.n_out)

    # pure-JAX reference of the exact PyTorch forward, for verification
    def reference(self, X1, X2):
        if self.lambd == 0:
            mult0 = jnp.float32(self.multipliers[0])
            out = (jnp.sum(X1.astype(jnp.float32) * X2.astype(jnp.float32),
                           axis=0) * mult0)[None, :, :]
            return out.astype(X1.dtype)
        mult = jnp.asarray(self.multipliers)
        contributions = (X1[self.m1_aligned].astype(jnp.float32)
                         * X2[self.m2_aligned].astype(jnp.float32)
                         * mult[:, None, None])
        result = jnp.zeros((2 * self.lambd + 1, X2.shape[1], X1.shape[2]),
                           dtype=jnp.float32)
        result = result.at[jnp.asarray(self.mu)].add(contributions)
        return result.astype(X1.dtype)


# ----------------------------------------------------------------------------
# Main
# ----------------------------------------------------------------------------
if __name__ == "__main__":
    key = jax.random.PRNGKey(0)

    # ---- case 1: lambd = 2, l1 = l2 = 2  (M1 = M2 = 5, out components = 5) --
    l1, l2, lambd = 2, 2, 2
    M1, M2 = 2 * l1 + 1, 2 * l2 + 1
    A, B = 8, 512  # feature axis (sublanes), structure/batch axis (lanes)

    # deterministic synthetic clebsch buffer (shape (2*l1+1, 2*l2+1))
    cleb = ((np.arange(M1 * M2, dtype=np.float32).reshape(M1, M2) % 7.0) - 3.0
            ) * 0.19 + 0.05

    mod = ClebschCombiningSingleUnrolledPallas(cleb, lambd)

    k1, k2 = jax.random.split(key)
    X1 = jax.random.normal(k1, (M1, A, B), dtype=jnp.float32)
    X2 = jax.random.normal(k2, (M2, A, B), dtype=jnp.float32)

    out = jax.block_until_ready(mod(X1, X2))
    ref = jax.block_until_ready(mod.reference(X1, X2))
    assert out.shape == (2 * lambd + 1, A, B)
    np.testing.assert_allclose(np.asarray(out), np.asarray(ref),
                               rtol=1e-5, atol=1e-5)

    # ---- case 2: lambd = 0, l1 = l2 = 1  (scalar-coupled path) --------------
    l1b = l2b = 1
    M1b, M2b = 2 * l1b + 1, 2 * l2b + 1
    Ab, Bb = 16, 256
    clebb = ((np.arange(M1b * M2b, dtype=np.float32).reshape(M1b, M2b) % 5.0)
             - 2.0) * 0.31 + 0.07
    mod0 = ClebschCombiningSingleUnrolledPallas(clebb, 0)

    k3, k4 = jax.random.split(k1)
    Y1 = jax.random.normal(k3, (M1b, Ab, Bb), dtype=jnp.float32)
    Y2 = jax.random.normal(k4, (M2b, Ab, Bb), dtype=jnp.float32)

    out0 = jax.block_until_ready(mod0(Y1, Y2))
    ref0 = jax.block_until_ready(mod0.reference(Y1, Y2))
    assert out0.shape == (1, Ab, Bb)
    np.testing.assert_allclose(np.asarray(out0), np.asarray(ref0),
                               rtol=1e-5, atol=1e-5)

    print("KERNEL_OK")
</pallas_src>

<mosaic_0001>
module attributes {stable_mosaic.version = 11 : i64} {
  func.func @kernel(%arg0: i32, %arg1: i32, %arg2: memref<5x8x512xf32, #tpu.memory_space<vmem>>, %arg3: memref<5x8x512xf32, #tpu.memory_space<vmem>>, %arg4: memref<5x8x512xf32, #tpu.memory_space<vmem>>) attributes {dimension_semantics = [#tpu.dimension_semantics<parallel>, #tpu.dimension_semantics<parallel>], iteration_bounds = array<i64: 1, 1>, scalar_prefetch = 0 : i64, scratch_operands = 0 : i64, tpu.core_type = #tpu.core_type<tc>, window_params = [{transform_indices = @transform_0, window_bounds = array<i64: 5, 8, 512>}, {transform_indices = @transform_1, window_bounds = array<i64: 5, 8, 512>}, {transform_indices = @transform_2, window_bounds = array<i64: 5, 8, 512>}]} {
    %c0 = arith.constant 0 : index
    %c0_0 = arith.constant 0 : index
    %c0_1 = arith.constant 0 : index
    %0 = vector.load %arg2[%c0, %c0_0, %c0_1] : memref<5x8x512xf32, #tpu.memory_space<vmem>>, vector<1x8x512xf32>
    %1 = vector.shape_cast %0 : vector<1x8x512xf32> to vector<8x512xf32>
    %c2 = arith.constant 2 : index
    %c0_2 = arith.constant 0 : index
    %c0_3 = arith.constant 0 : index
    %2 = vector.load %arg3[%c2, %c0_2, %c0_3] : memref<5x8x512xf32, #tpu.memory_space<vmem>>, vector<1x8x512xf32>
    %3 = vector.shape_cast %2 : vector<1x8x512xf32> to vector<8x512xf32>
    %4 = arith.mulf %1, %3 : vector<8x512xf32>
    %cst = arith.constant -1.400000e-01 : f32
    %5 = vector.broadcast %cst : f32 to vector<8x512xf32>
    %6 = arith.mulf %4, %5 : vector<8x512xf32>
    %c1 = arith.constant 1 : index
    %c0_4 = arith.constant 0 : index
    %c0_5 = arith.constant 0 : index
    %7 = vector.load %arg2[%c1, %c0_4, %c0_5] : memref<5x8x512xf32, #tpu.memory_space<vmem>>, vector<1x8x512xf32>
    %8 = vector.shape_cast %7 : vector<1x8x512xf32> to vector<8x512xf32>
    %c1_6 = arith.constant 1 : index
    %c0_7 = arith.constant 0 : index
    %c0_8 = arith.constant 0 : index
    %9 = vector.load %arg3[%c1_6, %c0_7, %c0_8] : memref<5x8x512xf32, #tpu.memory_space<vmem>>, vector<1x8x512xf32>
    %10 = vector.shape_cast %9 : vector<1x8x512xf32> to vector<8x512xf32>
    %11 = arith.mulf %8, %10 : vector<8x512xf32>
    %cst_9 = arith.constant 6.200000e-01 : f32
    %12 = vector.broadcast %cst_9 : f32 to vector<8x512xf32>
    %13 = arith.mulf %11, %12 : vector<8x512xf32>
    %14 = arith.addf %6, %13 : vector<8x512xf32>
    %c2_10 = arith.constant 2 : index
    %c0_11 = arith.constant 0 : index
    %c0_12 = arith.constant 0 : index
    %15 = vector.load %arg2[%c2_10, %c0_11, %c0_12] : memref<5x8x512xf32, #tpu.memory_space<vmem>>, vector<1x8x512xf32>
    %16 = vector.shape_cast %15 : vector<1x8x512xf32> to vector<8x512xf32>
    %c0_13 = arith.constant 0 : index
    %c0_14 = arith.constant 0 : index
    %c0_15 = arith.constant 0 : index
    %17 = vector.load %arg3[%c0_13, %c0_14, %c0_15] : memref<5x8x512xf32, #tpu.memory_space<vmem>>, vector<1x8x512xf32>
    %18 = vector.shape_cast %17 : vector<1x8x512xf32> to vector<8x512xf32>
    %19 = arith.mulf %16, %18 : vector<8x512xf32>
    %cst_16 = arith.constant 5.000000e-02 : f32
    %20 = vector.broadcast %cst_16 : f32 to vector<8x512xf32>
    %21 = arith.mulf %19, %20 : vector<8x512xf32>
    %22 = arith.addf %14, %21 : vector<8x512xf32>
    %c0_17 = arith.constant 0 : index
    %c0_18 = arith.constant 0 : index
    %c0_19 = arith.constant 0 : index
    %23 = vector.load %arg2[%c0_17, %c0_18, %c0_19] : memref<5x8x512xf32, #tpu.memory_space<vmem>>, vector<1x8x512xf32>
    %24 = vector.shape_cast %23 : vector<1x8x512xf32> to vector<8x512xf32>
    %c3 = arith.constant 3 : index
    %c0_20 = arith.constant 0 : index
    %c0_21 = arith.constant 0 : index
    %25 = vector.load %arg3[%c3, %c0_20, %c0_21] : memref<5x8x512xf32, #tpu.memory_space<vmem>>, vector<1x8x512xf32>
    %26 = vector.shape_cast %25 : vector<1x8x512xf32> to vector<8x512xf32>
    %27 = arith.mulf %24, %26 : vector<8x512xf32>
    %cst_22 = arith.constant 5.000000e-02 : f32
    %28 = vector.broadcast %cst_22 : f32 to vector<8x512xf32>
    %29 = arith.mulf %27, %28 : vector<8x512xf32>
    %c1_23 = arith.constant 1 : index
    %c0_24 = arith.constant 0 : index
    %c0_25 = arith.constant 0 : index
    %30 = vector.load %arg2[%c1_23, %c0_24, %c0_25] : memref<5x8x512xf32, #tpu.memory_space<vmem>>, vector<1x8x512xf32>
    %31 = vector.shape_cast %30 : vector<1x8x512xf32> to vector<8x512xf32>
    %c2_26 = arith.constant 2 : index
    %c0_27 = arith.constant 0 : index
    %c0_28 = arith.constant 0 : index
    %32 = vector.load %arg3[%c2_26, %c0_27, %c0_28] : memref<5x8x512xf32, #tpu.memory_space<vmem>>, vector<1x8x512xf32>
    %33 = vector.shape_cast %32 : vector<1x8x512xf32> to vector<8x512xf32>
    %34 = arith.mulf %31, %33 : vector<8x512xf32>
    %cst_29 = arith.constant -5.200000e-01 : f32
    %35 = vector.broadcast %cst_29 : f32 to vector<8x512xf32>
    %36 = arith.mulf %34, %35 : vector<8x512xf32>
    %37 = arith.addf %29, %36 : vector<8x512xf32>
    %c2_30 = arith.constant 2 : index
    %c0_31 = arith.constant 0 : index
    %c0_32 = arith.constant 0 : index
    %38 = vector.load %arg2[%c2_30, %c0_31, %c0_32] : memref<5x8x512xf32, #tpu.memory_space<vmem>>, vector<1x8x512xf32>
    %39 = vector.shape_cast %38 : vector<1x8x512xf32> to vector<8x512xf32>
    %c1_33 = arith.constant 1 : index
    %c0_34 = arith.constant 0 : index
    %c0_35 = arith.constant 0 : index
    %40 = vector.load %arg3[%c1_33, %c0_34, %c0_35] : memref<5x8x512xf32, #tpu.memory_space<vmem>>, vector<1x8x512xf32>
    %41 = vector.shape_cast %40 : vector<1x8x512xf32> to vector<8x512xf32>
    %42 = arith.mulf %39, %41 : vector<8x512xf32>
    %cst_36 = arith.constant 2.400000e-01 : f32
    %43 = vector.broadcast %cst_36 : f32 to vector<8x512xf32>
    %44 = arith.mulf %42, %43 : vector<8x512xf32>
    %45 = arith.addf %37, %44 : vector<8x512xf32>
    %c3_37 = arith.constant 3 : index
    %c0_38 = arith.constant 0 : index
    %c0_39 = arith.constant 0 : index
    %46 = vector.load %arg2[%c3_37, %c0_38, %c0_39] : memref<5x8x512xf32, #tpu.memory_space<vmem>>, vector<1x8x512xf32>
    %47 = vector.shape_cast %46 : vector<1x8x512xf32> to vector<8x512xf32>
    %c0_40 = arith.constant 0 : index
    %c0_41 = arith.constant 0 : index
    %c0_42 = arith.constant 0 : index
    %48 = vector.load %arg3[%c0_40, %c0_41, %c0_42] : memref<5x8x512xf32, #tpu.memory_space<vmem>>, vector<1x8x512xf32>
    %49 = vector.shape_cast %48 : vector<1x8x512xf32> to vector<8x512xf32>
    %50 = arith.mulf %47, %49 : vector<8x512xf32>
    %cst_43 = arith.constant -0.329999983 : f32
    %51 = vector.broadcast %cst_43 : f32 to vector<8x512xf32>
    %52 = arith.mulf %50, %51 : vector<8x512xf32>
    %53 = arith.addf %45, %52 : vector<8x512xf32>
    %c0_44 = arith.constant 0 : index
    %c0_45 = arith.constant 0 : index
    %c0_46 = arith.constant 0 : index
    %54 = vector.load %arg2[%c0_44, %c0_45, %c0_46] : memref<5x8x512xf32, #tpu.memory_space<vmem>>, vector<1x8x512xf32>
    %55 = vector.shape_cast %54 : vector<1x8x512xf32> to vector<8x512xf32>
    %c4 = arith.constant 4 : index
    %c0_47 = arith.constant 0 : index
    %c0_48 = arith.constant 0 : index
    %56 = vector.load %arg3[%c4, %c0_47, %c0_48] : memref<5x8x512xf32, #tpu.memory_space<vmem>>, vector<1x8x512xf32>
    %57 = vector.shape_cast %56 : vector<1x8x512xf32> to vector<8x512xf32>
    %58 = arith.mulf %55, %57 : vector<8x512xf32>
    %cst_49 = arith.constant 2.400000e-01 : f32
    %59 = vector.broadcast %cst_49 : f32 to vector<8x512xf32>
    %60 = arith.mulf %58, %59 : vector<8x512xf32>
    %c1_50 = arith.constant 1 : index
    %c0_51 = arith.constant 0 : index
    %c0_52 = arith.constant 0 : index
    %61 = vector.load %arg2[%c1_50, %c0_51, %c0_52] : memref<5x8x512xf32, #tpu.memory_space<vmem>>, vector<1x8x512xf32>
    %62 = vector.shape_cast %61 : vector<1x8x512xf32> to vector<8x512xf32>
    %c3_53 = arith.constant 3 : index
    %c0_54 = arith.constant 0 : index
    %c0_55 = arith.constant 0 : index
    %63 = vector.load %arg3[%c3_53, %c0_54, %c0_55] : memref<5x8x512xf32, #tpu.memory_space<vmem>>, vector<1x8x512xf32>
    %64 = vector.shape_cast %63 : vector<1x8x512xf32> to vector<8x512xf32>
    %65 = arith.mulf %62, %64 : vector<8x512xf32>
    %cst_56 = arith.constant -0.329999983 : f32
    %66 = vector.broadcast %cst_56 : f32 to vector<8x512xf32>
    %67 = arith.mulf %65, %66 : vector<8x512xf32>
    %68 = arith.addf %60, %67 : vector<8x512xf32>
    %c2_57 = arith.constant 2 : index
    %c0_58 = arith.constant 0 : index
    %c0_59 = arith.constant 0 : index
    %69 = vector.load %arg2[%c2_57, %c0_58, %c0_59] : memref<5x8x512xf32, #tpu.memory_space<vmem>>, vector<1x8x512xf32>
    %70 = vector.shape_cast %69 : vector<1x8x512xf32> to vector<8x512xf32>
    %c2_60 = arith.constant 2 : index
    %c0_61 = arith.constant 0 : index
    %c0_62 = arith.constant 0 : index
    %71 = vector.load %arg3[%c2_60, %c0_61, %c0_62] : memref<5x8x512xf32, #tpu.memory_space<vmem>>, vector<1x8x512xf32>
    %72 = vector.shape_cast %71 : vector<1x8x512xf32> to vector<8x512xf32>
    %73 = arith.mulf %70, %72 : vector<8x512xf32>
    %cst_63 = arith.constant 4.300000e-01 : f32
    %74 = vector.broadcast %cst_63 : f32 to vector<8x512xf32>
    %75 = arith.mulf %73, %74 : vector<8x512xf32>
    %76 = arith.addf %68, %75 : vector<8x512xf32>
    %c3_64 = arith.constant 3 : index
    %c0_65 = arith.constant 0 : index
    %c0_66 = arith.constant 0 : index
    %77 = vector.load %arg2[%c3_64, %c0_65, %c0_66] : memref<5x8x512xf32, #tpu.memory_space<vmem>>, vector<1x8x512xf32>
    %78 = vector.shape_cast %77 : vector<1x8x512xf32> to vector<8x512xf32>
    %c1_67 = arith.constant 1 : index
    %c0_68 = arith.constant 0 : index
    %c0_69 = arith.constant 0 : index
    %79 = vector.load %arg3[%c1_67, %c0_68, %c0_69] : memref<5x8x512xf32, #tpu.memory_space<vmem>>, vector<1x8x512xf32>
    %80 = vector.shape_cast %79 : vector<1x8x512xf32> to vector<8x512xf32>
    %81 = arith.mulf %78, %80 : vector<8x512xf32>
    %cst_70 = arith.constant -1.400000e-01 : f32
    %82 = vector.broadcast %cst_70 : f32 to vector<8x512xf32>
    %83 = arith.mulf %81, %82 : vector<8x512xf32>
    %84 = arith.addf %76, %83 : vector<8x512xf32>
    %c4_71 = arith.constant 4 : index
    %c0_72 = arith.constant 0 : index
    %c0_73 = arith.constant 0 : index
    %85 = vector.load %arg2[%c4_71, %c0_72, %c0_73] : memref<5x8x512xf32, #tpu.memory_space<vmem>>, vector<1x8x512xf32>
    %86 = vector.shape_cast %85 : vector<1x8x512xf32> to vector<8x512xf32>
    %c0_74 = arith.constant 0 : index
    %c0_75 = arith.constant 0 : index
    %c0_76 = arith.constant 0 : index
    %87 = vector.load %arg3[%c0_74, %c0_75, %c0_76] : memref<5x8x512xf32, #tpu.memory_space<vmem>>, vector<1x8x512xf32>
    %88 = vector.shape_cast %87 : vector<1x8x512xf32> to vector<8x512xf32>
    %89 = arith.mulf %86, %88 : vector<8x512xf32>
    %cst_77 = arith.constant 6.200000e-01 : f32
    %90 = vector.broadcast %cst_77 : f32 to vector<8x512xf32>
    %91 = arith.mulf %89, %90 : vector<8x512xf32>
    %92 = arith.addf %84, %91 : vector<8x512xf32>
    %c1_78 = arith.constant 1 : index
    %c0_79 = arith.constant 0 : index
    %c0_80 = arith.constant 0 : index
    %93 = vector.load %arg2[%c1_78, %c0_79, %c0_80] : memref<5x8x512xf32, #tpu.memory_space<vmem>>, vector<1x8x512xf32>
    %94 = vector.shape_cast %93 : vector<1x8x512xf32> to vector<8x512xf32>
    %c4_81 = arith.constant 4 : index
    %c0_82 = arith.constant 0 : index
    %c0_83 = arith.constant 0 : index
    %95 = vector.load %arg3[%c4_81, %c0_82, %c0_83] : memref<5x8x512xf32, #tpu.memory_space<vmem>>, vector<1x8x512xf32>
    %96 = vector.shape_cast %95 : vector<1x8x512xf32> to vector<8x512xf32>
    %97 = arith.mulf %94, %96 : vector<8x512xf32>
    %cst_84 = arith.constant -1.400000e-01 : f32
    %98 = vector.broadcast %cst_84 : f32 to vector<8x512xf32>
    %99 = arith.mulf %97, %98 : vector<8x512xf32>
    %c2_85 = arith.constant 2 : index
    %c0_86 = arith.constant 0 : index
    %c0_87 = arith.constant 0 : index
    %100 = vector.load %arg2[%c2_85, %c0_86, %c0_87] : memref<5x8x512xf32, #tpu.memory_space<vmem>>, vector<1x8x512xf32>
    %101 = vector.shape_cast %100 : vector<1x8x512xf32> to vector<8x512xf32>
    %c3_88 = arith.constant 3 : index
    %c0_89 = arith.constant 0 : index
    %c0_90 = arith.constant 0 : index
    %102 = vector.load %arg3[%c3_88, %c0_89, %c0_90] : memref<5x8x512xf32, #tpu.memory_space<vmem>>, vector<1x8x512xf32>
    %103 = vector.shape_cast %102 : vector<1x8x512xf32> to vector<8x512xf32>
    %104 = arith.mulf %101, %103 : vector<8x512xf32>
    %cst_91 = arith.constant 6.200000e-01 : f32
    %105 = vector.broadcast %cst_91 : f32 to vector<8x512xf32>
    %106 = arith.mulf %104, %105 : vector<8x512xf32>
    %107 = arith.addf %99, %106 : vector<8x512xf32>
    %c3_92 = arith.constant 3 : index
    %c0_93 = arith.constant 0 : index
    %c0_94 = arith.constant 0 : index
    %108 = vector.load %arg2[%c3_92, %c0_93, %c0_94] : memref<5x8x512xf32, #tpu.memory_space<vmem>>, vector<1x8x512xf32>
    %109 = vector.shape_cast %108 : vector<1x8x512xf32> to vector<8x512xf32>
    %c2_95 = arith.constant 2 : index
    %c0_96 = arith.constant 0 : index
    %c0_97 = arith.constant 0 : index
    %110 = vector.load %arg3[%c2_95, %c0_96, %c0_97] : memref<5x8x512xf32, #tpu.memory_space<vmem>>, vector<1x8x512xf32>
    %111 = vector.shape_cast %110 : vector<1x8x512xf32> to vector<8x512xf32>
    %112 = arith.mulf %109, %111 : vector<8x512xf32>
    %cst_98 = arith.constant 5.000000e-02 : f32
    %113 = vector.broadcast %cst_98 : f32 to vector<8x512xf32>
    %114 = arith.mulf %112, %113 : vector<8x512xf32>
    %115 = arith.addf %107, %114 : vector<8x512xf32>
    %c4_99 = arith.constant 4 : index
    %c0_100 = arith.constant 0 : index
    %c0_101 = arith.constant 0 : index
    %116 = vector.load %arg2[%c4_99, %c0_100, %c0_101] : memref<5x8x512xf32, #tpu.memory_space<vmem>>, vector<1x8x512xf32>
    %117 = vector.shape_cast %116 : vector<1x8x512xf32> to vector<8x512xf32>
    %c1_102 = arith.constant 1 : index
    %c0_103 = arith.constant 0 : index
    %c0_104 = arith.constant 0 : index
    %118 = vector.load %arg3[%c1_102, %c0_103, %c0_104] : memref<5x8x512xf32, #tpu.memory_space<vmem>>, vector<1x8x512xf32>
    %119 = vector.shape_cast %118 : vector<1x8x512xf32> to vector<8x512xf32>
    %120 = arith.mulf %117, %119 : vector<8x512xf32>
    %cst_105 = arith.constant -5.200000e-01 : f32
    %121 = vector.broadcast %cst_105 : f32 to vector<8x512xf32>
    %122 = arith.mulf %120, %121 : vector<8x512xf32>
    %123 = arith.addf %115, %122 : vector<8x512xf32>
    %c2_106 = arith.constant 2 : index
    %c0_107 = arith.constant 0 : index
    %c0_108 = arith.constant 0 : index
    %124 = vector.load %arg2[%c2_106, %c0_107, %c0_108] : memref<5x8x512xf32, #tpu.memory_space<vmem>>, vector<1x8x512xf32>
    %125 = vector.shape_cast %124 : vector<1x8x512xf32> to vector<8x512xf32>
    %c4_109 = arith.constant 4 : index
    %c0_110 = arith.constant 0 : index
    %c0_111 = arith.constant 0 : index
    %126 = vector.load %arg3[%c4_109, %c0_110, %c0_111] : memref<5x8x512xf32, #tpu.memory_space<vmem>>, vector<1x8x512xf32>
    %127 = vector.shape_cast %126 : vector<1x8x512xf32> to vector<8x512xf32>
    %128 = arith.mulf %125, %127 : vector<8x512xf32>
    %cst_112 = arith.constant -5.200000e-01 : f32
    %129 = vector.broadcast %cst_112 : f32 to vector<8x512xf32>
    %130 = arith.mulf %128, %129 : vector<8x512xf32>
    %c3_113 = arith.constant 3 : index
    %c0_114 = arith.constant 0 : index
    %c0_115 = arith.constant 0 : index
    %131 = vector.load %arg2[%c3_113, %c0_114, %c0_115] : memref<5x8x512xf32, #tpu.memory_space<vmem>>, vector<1x8x512xf32>
    %132 = vector.shape_cast %131 : vector<1x8x512xf32> to vector<8x512xf32>
    %c3_116 = arith.constant 3 : index
    %c0_117 = arith.constant 0 : index
    %c0_118 = arith.constant 0 : index
    %133 = vector.load %arg3[%c3_116, %c0_117, %c0_118] : memref<5x8x512xf32, #tpu.memory_space<vmem>>, vector<1x8x512xf32>
    %134 = vector.shape_cast %133 : vector<1x8x512xf32> to vector<8x512xf32>
    %135 = arith.mulf %132, %134 : vector<8x512xf32>
    %cst_119 = arith.constant 2.400000e-01 : f32
    %136 = vector.broadcast %cst_119 : f32 to vector<8x512xf32>
    %137 = arith.mulf %135, %136 : vector<8x512xf32>
    %138 = arith.addf %130, %137 : vector<8x512xf32>
    %c4_120 = arith.constant 4 : index
    %c0_121 = arith.constant 0 : index
    %c0_122 = arith.constant 0 : index
    %139 = vector.load %arg2[%c4_120, %c0_121, %c0_122] : memref<5x8x512xf32, #tpu.memory_space<vmem>>, vector<1x8x512xf32>
    %140 = vector.shape_cast %139 : vector<1x8x512xf32> to vector<8x512xf32>
    %c2_123 = arith.constant 2 : index
    %c0_124 = arith.constant 0 : index
    %c0_125 = arith.constant 0 : index
    %141 = vector.load %arg3[%c2_123, %c0_124, %c0_125] : memref<5x8x512xf32, #tpu.memory_space<vmem>>, vector<1x8x512xf32>
    %142 = vector.shape_cast %141 : vector<1x8x512xf32> to vector<8x512xf32>
    %143 = arith.mulf %140, %142 : vector<8x512xf32>
    %cst_126 = arith.constant -0.329999983 : f32
    %144 = vector.broadcast %cst_126 : f32 to vector<8x512xf32>
    %145 = arith.mulf %143, %144 : vector<8x512xf32>
    %146 = arith.addf %138, %145 : vector<8x512xf32>
    %c0_127 = arith.constant 0 : index
    %c0_128 = arith.constant 0 : index
    %c0_129 = arith.constant 0 : index
    %147 = vector.load %arg4[%c0_127, %c0_128, %c0_129] : memref<5x8x512xf32, #tpu.memory_space<vmem>>, vector<1x8x512xf32>
    %148 = vector.shape_cast %147 : vector<1x8x512xf32> to vector<8x512xf32>
    %149 = vector.shape_cast %22 : vector<8x512xf32> to vector<1x8x512xf32>
    tpu.vector_store %arg4[%c0_127, %c0_128, %c0_129], %149 {strides = array<i32>} : memref<5x8x512xf32, #tpu.memory_space<vmem>>, vector<1x8x512xf32>,
    %c1_130 = arith.constant 1 : index
    %c0_131 = arith.constant 0 : index
    %c0_132 = arith.constant 0 : index
    %150 = vector.load %arg4[%c1_130, %c0_131, %c0_132] : memref<5x8x512xf32, #tpu.memory_space<vmem>>, vector<1x8x512xf32>
    %151 = vector.shape_cast %150 : vector<1x8x512xf32> to vector<8x512xf32>
    %152 = vector.shape_cast %53 : vector<8x512xf32> to vector<1x8x512xf32>
    tpu.vector_store %arg4[%c1_130, %c0_131, %c0_132], %152 {strides = array<i32>} : memref<5x8x512xf32, #tpu.memory_space<vmem>>, vector<1x8x512xf32>,
    %c2_133 = arith.constant 2 : index
    %c0_134 = arith.constant 0 : index
    %c0_135 = arith.constant 0 : index
    %153 = vector.load %arg4[%c2_133, %c0_134, %c0_135] : memref<5x8x512xf32, #tpu.memory_space<vmem>>, vector<1x8x512xf32>
    %154 = vector.shape_cast %153 : vector<1x8x512xf32> to vector<8x512xf32>
    %155 = vector.shape_cast %92 : vector<8x512xf32> to vector<1x8x512xf32>
    tpu.vector_store %arg4[%c2_133, %c0_134, %c0_135], %155 {strides = array<i32>} : memref<5x8x512xf32, #tpu.memory_space<vmem>>, vector<1x8x512xf32>,
    %c3_136 = arith.constant 3 : index
    %c0_137 = arith.constant 0 : index
    %c0_138 = arith.constant 0 : index
    %156 = vector.load %arg4[%c3_136, %c0_137, %c0_138] : memref<5x8x512xf32, #tpu.memory_space<vmem>>, vector<1x8x512xf32>
    %157 = vector.shape_cast %156 : vector<1x8x512xf32> to vector<8x512xf32>
    %158 = vector.shape_cast %123 : vector<8x512xf32> to vector<1x8x512xf32>
    tpu.vector_store %arg4[%c3_136, %c0_137, %c0_138], %158 {strides = array<i32>} : memref<5x8x512xf32, #tpu.memory_space<vmem>>, vector<1x8x512xf32>,
    %c4_139 = arith.constant 4 : index
    %c0_140 = arith.constant 0 : index
    %c0_141 = arith.constant 0 : index
    %159 = vector.load %arg4[%c4_139, %c0_140, %c0_141] : memref<5x8x512xf32, #tpu.memory_space<vmem>>, vector<1x8x512xf32>
    %160 = vector.shape_cast %159 : vector<1x8x512xf32> to vector<8x512xf32>
    %161 = vector.shape_cast %146 : vector<8x512xf32> to vector<1x8x512xf32>
    tpu.vector_store %arg4[%c4_139, %c0_140, %c0_141], %161 {strides = array<i32>} : memref<5x8x512xf32, #tpu.memory_space<vmem>>, vector<1x8x512xf32>,
    return
  }
  func.func @transform_0(%arg0: i32, %arg1: i32) -> (i32, i32, i32) {
    %c0_i32 = arith.constant 0 : i32
    %c0_i32_0 = arith.constant 0 : i32
    return %c0_i32, %arg0, %arg1 : i32, i32, i32
  }
  func.func @transform_1(%arg0: i32, %arg1: i32) -> (i32, i32, i32) {
    %c0_i32 = arith.constant 0 : i32
    %c0_i32_0 = arith.constant 0 : i32
    return %c0_i32, %arg0, %arg1 : i32, i32, i32
  }
  func.func @transform_2(%arg0: i32, %arg1: i32) -> (i32, i32, i32) {
    %c0_i32 = arith.constant 0 : i32
    %c0_i32_0 = arith.constant 0 : i32
    return %c0_i32, %arg0, %arg1 : i32, i32, i32
  }
}

</mosaic_0001>

<llo_original>
// kernel: tpu_custom_call.1
$region0: #{tpu_custom_call.1}
  #allocation0 [shape = 'u32[]', space=smem, size = 0x4, offset = 0x4, fixed_abs, tag = 'smem constant byte address 0x4 - core index']
  #allocation1 [shape = 'u32[144,128]{1,0:T(1,128)}', space=vmem, size = 0x12000, scoped, tag = 'internal scratch']
  %s0 = inlined_call_operand.hbm [shape: f32[5,8,512], index: 0, kind: input, shape index: {}]
  %s1 = inlined_call_operand.hbm [shape: f32[5,8,512], index: 1, kind: input, shape index: {}]
  %s2 = inlined_call_operand.hbm [shape: f32[5,8,512], index: 2, kind: output, shape index: {}]
  %s3 = sld [smem:[#allocation0]]
  $region26: #{tpu_custom_call.1} parent=0
    _
  %s5 = ssub.s32 1, %s3
  %s6 = scalar_select 0, %s5, %s3
  $region1: #{tpu_custom_call.1} parent=0
    #allocation2 [shape = 'u8[81920]{0}', space=vmem, size = 0x14000, scoped, tag = 'input window, operand 0, single buffered']
    #allocation3 [shape = 's32[1]{0}', space=sflag, size = 0x4, scoped, tag = 'scoped memory for tpu_custom_call.1']
    #allocation4 [shape = 's32[1]{0}', space=sflag, size = 0x4, scoped, tag = 'scoped memory for tpu_custom_call.1']
    #allocation5 [shape = 'u8[81920]{0}', space=vmem, size = 0x14000, scoped, tag = 'input window, operand 1, single buffered']
    #allocation6 [shape = 's32[1]{0}', space=sflag, size = 0x4, scoped, tag = 'scoped memory for tpu_custom_call.1']
    #allocation7 [shape = 'u8[81920]{0}', space=vmem, size = 0x14000, scoped, tag = 'output window, operand 0, single buffered']
    %7 = vsyncpa [#allocation3], 0
    %8 = vsyncpa [#allocation6], 0
    %9 = vsyncpa [#allocation4], 0
    // Predicated region
    $region2: #{tpu_custom_call.1} parent=1 // pred_check
      _
    $region3: #{tpu_custom_call.1} parent=1 // pred_check_branch
      %11 = sbr.rel (0) target = $region5
    $region4: #{tpu_custom_call.1} parent=1 // pred_region
      %s13 = ssub.s32 2560, 2560
      %14 = vsyncadd [#allocation3], %s13
      %s15 = sshll.u32 [#allocation2], 4
      %s16 = int_to_ptr.vmem [resolvable:$true] %s15
      %21 = dma.hbm_to_vmem [thread:$0]  %s0, 2560, %s16, [#allocation3], 512, 512, 32
    $region5: #{tpu_custom_call.1} parent=1 // pred_fallthru
      _
    // Predicated region
    $region6: #{tpu_custom_call.1} parent=1 // pred_check
      _
    $region7: #{tpu_custom_call.1} parent=1 // pred_check_branch
      %23 = sbr.rel (0) target = $region9
    $region8: #{tpu_custom_call.1} parent=1 // pred_region
      %s25 = ssub.s32 2560, 2560
      %26 = vsyncadd [#allocation6], %s25
      %s27 = sshll.u32 [#allocation5], 4
      %s28 = int_to_ptr.vmem [resolvable:$true] %s27
      %33 = dma.hbm_to_vmem [thread:$0]  %s1, 2560, %s28, [#allocation6], 512, 512, 32
    $region9: #{tpu_custom_call.1} parent=1 // pred_fallthru
      _
    // Predicated region
    $region10: #{tpu_custom_call.1} parent=1 // pred_check
      _
    $region11: #{tpu_custom_call.1} parent=1 // pred_check_branch
      %35 = sbr.rel (0) target = $region13
    $region12: #{tpu_custom_call.1} parent=1 // pred_region
      %36 = dma.done [#allocation3], 2560
    $region13: #{tpu_custom_call.1} parent=1 // pred_fallthru
      _
    // Predicated region
    $region14: #{tpu_custom_call.1} parent=1 // pred_check
      _
    $region15: #{tpu_custom_call.1} parent=1 // pred_check_branch
      %38 = sbr.rel (0) target = $region17
    $region16: #{tpu_custom_call.1} parent=1 // pred_region
      %39 = dma.done [#allocation6], 2560
    $region17: #{tpu_custom_call.1} parent=1 // pred_fallthru
      _
    %v40 = vld [vmem:[#allocation2] sm:$0xff]
    %v41 = vld [vmem:[#allocation2 + $0x8] sm:$0xff]
    %v42 = vld [vmem:[#allocation2 + $0x10] sm:$0xff]
    %v43 = vld [vmem:[#allocation2 + $0x18] sm:$0xff]
    %s44 = scalar_lea.vmem [#allocation5], 64
    %v45 = vld [vmem:[%s44] sm:$0xff]
    %v46 = vld [vmem:[%s44 + $0x8] sm:$0xff]
    %v47 = vld [vmem:[%s44 + $0x10] sm:$0xff]
    %v48 = vld [vmem:[%s44 + $0x18] sm:$0xff]
    %v49 = vmul.f32 %v40, %v45
    %v50 = vmul.f32 %v41, %v46
    %v51 = vmul.f32 %v42, %v47
    %v52 = vmul.f32 %v43, %v48
    %v53 = vmul.f32 %v49, -0.14
    %v54 = vmul.f32 %v50, -0.14
    %v55 = vmul.f32 %v51, -0.14
    %v56 = vmul.f32 %v52, -0.14
    %s57 = scalar_lea.vmem [#allocation2], 32
    %v58 = vld [vmem:[%s57] sm:$0xff]
    %v59 = vld [vmem:[%s57 + $0x8] sm:$0xff]
    %v60 = vld [vmem:[%s57 + $0x10] sm:$0xff]
    %v61 = vld [vmem:[%s57 + $0x18] sm:$0xff]
    %s62 = scalar_lea.vmem [#allocation5], 32
    %v63 = vld [vmem:[%s62] sm:$0xff]
    %v64 = vld [vmem:[%s62 + $0x8] sm:$0xff]
    %v65 = vld [vmem:[%s62 + $0x10] sm:$0xff]
    %v66 = vld [vmem:[%s62 + $0x18] sm:$0xff]
    %v67 = vmul.f32 %v58, %v63
    %v68 = vmul.f32 %v59, %v64
    %v69 = vmul.f32 %v60, %v65
    %v70 = vmul.f32 %v61, %v66
    %v71 = vmul.f32 %v67, 0.62
    %v72 = vmul.f32 %v68, 0.62
    %v73 = vmul.f32 %v69, 0.62
    %v74 = vmul.f32 %v70, 0.62
    %v75 = vadd.f32 %v53, %v71
    %v76 = vadd.f32 %v54, %v72
    %v77 = vadd.f32 %v55, %v73
    %v78 = vadd.f32 %v56, %v74
    %s79 = scalar_lea.vmem [#allocation2], 64
    %v80 = vld [vmem:[%s79] sm:$0xff]
    %v81 = vld [vmem:[%s79 + $0x8] sm:$0xff]
    %v82 = vld [vmem:[%s79 + $0x10] sm:$0xff]
    %v83 = vld [vmem:[%s79 + $0x18] sm:$0xff]
    %v84 = vld [vmem:[#allocation5] sm:$0xff]
    %v85 = vld [vmem:[#allocation5 + $0x8] sm:$0xff]
    %v86 = vld [vmem:[#allocation5 + $0x10] sm:$0xff]
    %v87 = vld [vmem:[#allocation5 + $0x18] sm:$0xff]
    %v88 = vmul.f32 %v80, %v84
    %v89 = vmul.f32 %v81, %v85
    %v90 = vmul.f32 %v82, %v86
    %v91 = vmul.f32 %v83, %v87
    %v92 = vmul.f32 %v88, 0.05
    %v93 = vmul.f32 %v89, 0.05
    %v94 = vmul.f32 %v90, 0.05
    %v95 = vmul.f32 %v91, 0.05
    %v96 = vadd.f32 %v75, %v92
    %v97 = vadd.f32 %v76, %v93
    %v98 = vadd.f32 %v77, %v94
    %v99 = vadd.f32 %v78, %v95
    %s100 = scalar_lea.vmem [#allocation5], 96
    %v101 = vld [vmem:[%s100] sm:$0xff]
    %v102 = vld [vmem:[%s100 + $0x8] sm:$0xff]
    %v103 = vld [vmem:[%s100 + $0x10] sm:$0xff]
    %v104 = vld [vmem:[%s100 + $0x18] sm:$0xff]
    %v105 = vmul.f32 %v40, %v101
    %v106 = vmul.f32 %v41, %v102
    %v107 = vmul.f32 %v42, %v103
    %v108 = vmul.f32 %v43, %v104
    %v109 = vmul.f32 %v105, 0.05
    %v110 = vmul.f32 %v106, 0.05
    %v111 = vmul.f32 %v107, 0.05
    %v112 = vmul.f32 %v108, 0.05
    %v113 = vmul.f32 %v58, %v45
    %v114 = vmul.f32 %v59, %v46
    %v115 = vmul.f32 %v60, %v47
    %v116 = vmul.f32 %v61, %v48
    %v117 = vmul.f32 %v113, -0.52
    %v118 = vmul.f32 %v114, -0.52
    %v119 = vmul.f32 %v115, -0.52
    %v120 = vmul.f32 %v116, -0.52
    %v121 = vadd.f32 %v109, %v117
    %v122 = vadd.f32 %v110, %v118
    %v123 = vadd.f32 %v111, %v119
    %v124 = vadd.f32 %v112, %v120
    %v125 = vmul.f32 %v80, %v63
    %v126 = vmul.f32 %v81, %v64
    %v127 = vmul.f32 %v82, %v65
    %v128 = vmul.f32 %v83, %v66
    %v129 = vmul.f32 %v125, 0.24
    %v130 = vmul.f32 %v126, 0.24
    %v131 = vmul.f32 %v127, 0.24
    %v132 = vmul.f32 %v128, 0.24
    %v133 = vadd.f32 %v121, %v129
    %v134 = vadd.f32 %v122, %v130
    %v135 = vadd.f32 %v123, %v131
    %v136 = vadd.f32 %v124, %v132
    %s137 = scalar_lea.vmem [#allocation2], 96
    %v138 = vld [vmem:[%s137] sm:$0xff]
    %v139 = vld [vmem:[%s137 + $0x8] sm:$0xff]
    %v140 = vld [vmem:[%s137 + $0x10] sm:$0xff]
    %v141 = vld [vmem:[%s137 + $0x18] sm:$0xff]
    %v142 = vmul.f32 %v138, %v84
    %v143 = vmul.f32 %v139, %v85
    %v144 = vmul.f32 %v140, %v86
    %v145 = vmul.f32 %v141, %v87
    %v146 = vmul.f32 %v142, -0.32999998
    %v147 = vmul.f32 %v143, -0.32999998
    %v148 = vmul.f32 %v144, -0.32999998
    %v149 = vmul.f32 %v145, -0.32999998
    %v150 = vadd.f32 %v133, %v146
    %v151 = vadd.f32 %v134, %v147
    %v152 = vadd.f32 %v135, %v148
    %v153 = vadd.f32 %v136, %v149
    %s154 = scalar_lea.vmem [#allocation5], 128
    %v155 = vld [vmem:[%s154] sm:$0xff]
    %v156 = vld [vmem:[%s154 + $0x8] sm:$0xff]
    %v157 = vld [vmem:[%s154 + $0x10] sm:$0xff]
    %v158 = vld [vmem:[%s154 + $0x18] sm:$0xff]
    %v159 = vmul.f32 %v40, %v155
    %v160 = vmul.f32 %v41, %v156
    %v161 = vmul.f32 %v42, %v157
    %v162 = vmul.f32 %v43, %v158
    %v163 = vmul.f32 %v159, 0.24
    %v164 = vmul.f32 %v160, 0.24
    %v165 = vmul.f32 %v161, 0.24
    %v166 = vmul.f32 %v162, 0.24
    %v167 = vmul.f32 %v58, %v101
    %v168 = vmul.f32 %v59, %v102
    %v169 = vmul.f32 %v60, %v103
    %v170 = vmul.f32 %v61, %v104
    %v171 = vmul.f32 %v167, -0.32999998
    %v172 = vmul.f32 %v168, -0.32999998
    %v173 = vmul.f32 %v169, -0.32999998
    %v174 = vmul.f32 %v170, -0.32999998
    %v175 = vadd.f32 %v163, %v171
    %v176 = vadd.f32 %v164, %v172
    %v177 = vadd.f32 %v165, %v173
    %v178 = vadd.f32 %v166, %v174
    %v179 = vmul.f32 %v80, %v45
    %v180 = vmul.f32 %v81, %v46
    %v181 = vmul.f32 %v82, %v47
    %v182 = vmul.f32 %v83, %v48
    %v183 = vmul.f32 %v179, 0.43
    %v184 = vmul.f32 %v180, 0.43
    %v185 = vmul.f32 %v181, 0.43
    %v186 = vmul.f32 %v182, 0.43
    %v187 = vadd.f32 %v175, %v183
    %v188 = vadd.f32 %v176, %v184
    %v189 = vadd.f32 %v177, %v185
    %v190 = vadd.f32 %v178, %v186
    %v191 = vmul.f32 %v138, %v63
    %v192 = vmul.f32 %v139, %v64
    %v193 = vmul.f32 %v140, %v65
    %v194 = vmul.f32 %v141, %v66
    %v195 = vmul.f32 %v191, -0.14
    %v196 = vmul.f32 %v192, -0.14
    %v197 = vmul.f32 %v193, -0.14
    %v198 = vmul.f32 %v194, -0.14
    %v199 = vadd.f32 %v187, %v195
    %v200 = vadd.f32 %v188, %v196
    %v201 = vadd.f32 %v189, %v197
    %v202 = vadd.f32 %v190, %v198
    %s203 = scalar_lea.vmem [#allocation2], 128
    %v204 = vld [vmem:[%s203] sm:$0xff]
    %v205 = vld [vmem:[%s203 + $0x8] sm:$0xff]
    %v206 = vld [vmem:[%s203 + $0x10] sm:$0xff]
    %v207 = vld [vmem:[%s203 + $0x18] sm:$0xff]
    %v208 = vmul.f32 %v204, %v84
    %v209 = vmul.f32 %v205, %v85
    %v210 = vmul.f32 %v206, %v86
    %v211 = vmul.f32 %v207, %v87
    %v212 = vmul.f32 %v208, 0.62
    %v213 = vmul.f32 %v209, 0.62
    %v214 = vmul.f32 %v210, 0.62
    %v215 = vmul.f32 %v211, 0.62
    %v216 = vadd.f32 %v199, %v212
    %v217 = vadd.f32 %v200, %v213
    %v218 = vadd.f32 %v201, %v214
    %v219 = vadd.f32 %v202, %v215
    %v220 = vmul.f32 %v58, %v155
    %v221 = vmul.f32 %v59, %v156
    %v222 = vmul.f32 %v60, %v157
    %v223 = vmul.f32 %v61, %v158
    %v224 = vmul.f32 %v220, -0.14
    %v225 = vmul.f32 %v221, -0.14
    %v226 = vmul.f32 %v222, -0.14
    %v227 = vmul.f32 %v223, -0.14
    %v228 = vmul.f32 %v80, %v101
    %v229 = vmul.f32 %v81, %v102
    %v230 = vmul.f32 %v82, %v103
    %v231 = vmul.f32 %v83, %v104
    %v232 = vmul.f32 %v228, 0.62
    %v233 = vmul.f32 %v229, 0.62
    %v234 = vmul.f32 %v230, 0.62
    %v235 = vmul.f32 %v231, 0.62
    %v236 = vadd.f32 %v224, %v232
    %v237 = vadd.f32 %v225, %v233
    %v238 = vadd.f32 %v226, %v234
    %v239 = vadd.f32 %v227, %v235
    %v240 = vmul.f32 %v138, %v45
    %v241 = vmul.f32 %v139, %v46
    %v242 = vmul.f32 %v140, %v47
    %v243 = vmul.f32 %v141, %v48
    %v244 = vmul.f32 %v240, 0.05
    %v245 = vmul.f32 %v241, 0.05
    %v246 = vmul.f32 %v242, 0.05
    %v247 = vmul.f32 %v243, 0.05
    %v248 = vadd.f32 %v236, %v244
    %v249 = vadd.f32 %v237, %v245
    %v250 = vadd.f32 %v238, %v246
    %v251 = vadd.f32 %v239, %v247
    %v252 = vmul.f32 %v204, %v63
    %v253 = vmul.f32 %v205, %v64
    %v254 = vmul.f32 %v206, %v65
    %v255 = vmul.f32 %v207, %v66
    %v256 = vmul.f32 %v252, -0.52
    %v257 = vmul.f32 %v253, -0.52
    %v258 = vmul.f32 %v254, -0.52
    %v259 = vmul.f32 %v255, -0.52
    %v260 = vadd.f32 %v248, %v256
    %v261 = vadd.f32 %v249, %v257
    %v262 = vadd.f32 %v250, %v258
    %v263 = vadd.f32 %v251, %v259
    %v264 = vmul.f32 %v80, %v155
    %v265 = vmul.f32 %v81, %v156
    %v266 = vmul.f32 %v82, %v157
    %v267 = vmul.f32 %v83, %v158
    %v268 = vmul.f32 %v264, -0.52
    %v269 = vmul.f32 %v265, -0.52
    %v270 = vmul.f32 %v266, -0.52
    %v271 = vmul.f32 %v267, -0.52
    %v272 = vmul.f32 %v138, %v101
    %v273 = vmul.f32 %v139, %v102
    %v274 = vmul.f32 %v140, %v103
    %v275 = vmul.f32 %v141, %v104
    %v276 = vmul.f32 %v272, 0.24
    %v277 = vmul.f32 %v273, 0.24
    %v278 = vmul.f32 %v274, 0.24
    %v279 = vmul.f32 %v275, 0.24
    %v280 = vadd.f32 %v268, %v276
    %v281 = vadd.f32 %v269, %v277
    %v282 = vadd.f32 %v270, %v278
    %v283 = vadd.f32 %v271, %v279
    %v284 = vmul.f32 %v204, %v45
    %v285 = vmul.f32 %v205, %v46
    %v286 = vmul.f32 %v206, %v47
    %v287 = vmul.f32 %v207, %v48
    %v288 = vmul.f32 %v284, -0.32999998
    %v289 = vmul.f32 %v285, -0.32999998
    %v290 = vmul.f32 %v286, -0.32999998
    %v291 = vmul.f32 %v287, -0.32999998
    %v292 = vadd.f32 %v280, %v288
    %v293 = vadd.f32 %v281, %v289
    %v294 = vadd.f32 %v282, %v290
    %v295 = vadd.f32 %v283, %v291
    %296 = vst [vmem:[#allocation7] sm:$0xff] %v96
    %297 = vst [vmem:[#allocation7 + $0x8] sm:$0xff] %v97
    %298 = vst [vmem:[#allocation7 + $0x10] sm:$0xff] %v98
    %299 = vst [vmem:[#allocation7 + $0x18] sm:$0xff] %v99
    %s300 = scalar_lea.vmem [#allocation7], 32
    %301 = vst [vmem:[%s300] sm:$0xff] %v150
    %302 = vst [vmem:[%s300 + $0x8] sm:$0xff] %v151
    %303 = vst [vmem:[%s300 + $0x10] sm:$0xff] %v152
    %304 = vst [vmem:[%s300 + $0x18] sm:$0xff] %v153
    %s305 = scalar_lea.vmem [#allocation7], 64
    %306 = vst [vmem:[%s305] sm:$0xff] %v216
    %307 = vst [vmem:[%s305 + $0x8] sm:$0xff] %v217
    %308 = vst [vmem:[%s305 + $0x10] sm:$0xff] %v218
    %309 = vst [vmem:[%s305 + $0x18] sm:$0xff] %v219
    %s310 = scalar_lea.vmem [#allocation7], 96
    %311 = vst [vmem:[%s310] sm:$0xff] %v260
    %312 = vst [vmem:[%s310 + $0x8] sm:$0xff] %v261
    %313 = vst [vmem:[%s310 + $0x10] sm:$0xff] %v262
    %314 = vst [vmem:[%s310 + $0x18] sm:$0xff] %v263
    %s315 = scalar_lea.vmem [#allocation7], 128
    %316 = vst [vmem:[%s315] sm:$0xff] %v292
    %317 = vst [vmem:[%s315 + $0x8] sm:$0xff] %v293
    %318 = vst [vmem:[%s315 + $0x10] sm:$0xff] %v294
    %319 = vst [vmem:[%s315 + $0x18] sm:$0xff] %v295
    // Predicated region
    $region18: #{tpu_custom_call.1} parent=1 // pred_check
      _
    $region19: #{tpu_custom_call.1} parent=1 // pred_check_branch
      %321 = sbr.rel (0) target = $region21
    $region20: #{tpu_custom_call.1} parent=1 // pred_region
      %s323 = ssub.s32 2560, 2560
      %324 = vsyncadd [#allocation4], %s323
      %s325 = sshll.u32 [#allocation7], 4
      %s326 = int_to_ptr.vmem [resolvable:$true] %s325
      %331 = dma.vmem_to_hbm [thread:$0]  %s326, 2560, %s2, [#allocation4], 512, 512, 32
    $region21: #{tpu_custom_call.1} parent=1 // pred_fallthru
      _
    // Predicated region
    $region22: #{tpu_custom_call.1} parent=1 // pred_check
      _
    $region23: #{tpu_custom_call.1} parent=1 // pred_check_branch
      %333 = sbr.rel (0) target = $region25
    $region24: #{tpu_custom_call.1} parent=1 // pred_region
      %334 = dma.done [#allocation4], 2560
    $region25: #{tpu_custom_call.1} parent=1 // pred_fallthru
      _
    %335 = vsyncpa [#allocation3], 1
    %336 = vsyncpa [#allocation6], 1
    %337 = vsyncpa [#allocation4], 1

</llo_original>
